<compile_context>
chip_gen: v7x
topology: tpu7x:2x2x1
jax: 0.10.0
libtpu: 0.0.40
codegen_flags: <defaults>
</compile_context>

<pallas_src>
import math
from functools import partial

import jax
import jax.numpy as jnp
from jax.experimental import pallas as pl
from jax.experimental.pallas import tpu as pltpu


# ------------------------- Pallas kernel -------------------------

def _gram_kernel(xr_ref, xc_ref, sqr_ref, sqc_ref, a_ref, *, inv_two_sigma2, log_n):
    """One (TM, TN) tile of A/trace(A), with trace(A) = N analytic.

    A_ij = exp(-||x_i - x_j||^2 * inv_two_sigma2 - log N)
    Row/col squared norms are precomputed in the wrapper (sqr: (TM,1), sqc: (1,TN)).
    """
    tm, tn = a_ref.shape
    # Contract last dims of both operands -> no transposed copy of x before the MXU.
    g = jax.lax.dot_general(
        xr_ref[...], xc_ref[...],
        dimension_numbers=(((1,), (1,)), ((), ())),
        preferred_element_type=jnp.float32)                      # (TM, TN) f32
    d2 = jnp.maximum(sqr_ref[...] + sqc_ref[...] - 2.0 * g, 0.0)
    # Force the exact diagonal (||x_i - x_i||^2 == 0) so trace(A) = N holds even
    # with bf16 operands; cheap VPU compare+select per tile.
    row = pl.program_id(0) * tm + jax.lax.broadcasted_iota(jnp.int32, (tm, tn), 0)
    col = pl.program_id(1) * tn + jax.lax.broadcasted_iota(jnp.int32, (tm, tn), 1)
    d2 = jnp.where(row == col, 0.0, d2)
    # trace(A) = N analytically; fold the 1/N into the exp argument.
    a_ref[...] = jnp.exp(-d2 * inv_two_sigma2 - log_n)


def _round_up(x, m):
    return ((x + m - 1) // m) * m


# ------------------------- Python wrapper -------------------------

class AlphaEntropy:
    def __init__(self, sigma_zero, alpha=1.01):
        assert float(alpha) != 1.0, "alpha must not equal 1.0 (division by 1 - alpha)"
        self.sigma_zero = float(sigma_zero)
        self.alpha = float(alpha)
        self.epsilon = 1e-8

    def normalize_scale(self, x):
        # torch.std uses ddof=1 (unbiased); only used on the ns=True path.
        x_mean = jnp.mean(x, axis=0)
        x_std = jnp.std(x, axis=0, ddof=1)
        return (x - x_mean) / (x_std + self.epsilon)

    def gaussian_gram(self, x, ns=False, nd=False):
        if x.ndim == 1:
            x = x.reshape(-1, 1)
        x = x.astype(jnp.float32)
        N, d = x.shape
        if ns:
            x = self.normalize_scale(x)
        sigma = self.sigma_zero * N ** (-1.0 / (4 + d))
        if nd:
            sigma = sigma * float(d) ** 0.5
        inv_two_sigma2 = 0.5 / (sigma * sigma)

        # bf16 operands only once the matmul is big & deep enough to be MXU-bound
        # (per review: gate on d too — bf16 error is O(eps * ||x||^2) on d2).
        use_bf16 = (N >= 512) and (d >= 64)
        in_dtype = jnp.bfloat16 if use_bf16 else jnp.float32
        in_isz = 2 if use_bf16 else 4

        # Generation-aware VMEM budget (v7x: 64 MiB, v5e/v6e: 128 MiB).
        try:
            vmem_cap = int(pltpu.get_tpu_info().vmem_capacity_bytes)
        except Exception:  # conservative fallback = smallest generation
            vmem_cap = 64 << 20
        vmem_budget = (vmem_cap * 3) // 4

        def _need(tm, tn):
            # double-buffered row/col x blocks + norm blocks + output tile
            return 2 * ((tm + tn) * d * in_isz + (tm + tn) * 4 + tm * tn * 4)

        # Tile selection: biggest lane-dense tile that (a) leaves >=4 tiles per
        # parallel grid axis (v7x has 2 TCs) and (b) fits VMEM with 2x headroom.
        TM = TN = 128
        for cand in (512, 256):
            if N >= 4 * cand and 2 * _need(cand, cand) <= vmem_budget:
                TM = TN = cand
                break
        # Very deep feature dims: shrink the sublane tile, keep the lane-dense TN.
        while 2 * _need(TM, TN) > vmem_budget and TM > 16:
            TM //= 2

        grid = (pl.cdiv(N, TM), pl.cdiv(N, TN))
        gi, gj = grid
        # Pad input rows so all *loads* stay full tiles; the (N, N) output uses
        # masked edge stores instead of a post-call slice copy.
        n_pad = _round_up(N, TN)  # TN >= TM and both powers of two -> covers both

        x_p = jnp.zeros((n_pad, d), jnp.float32).at[:N, :].set(x)
        sq = jnp.sum(x_p * x_p, axis=-1)                      # (n_pad,) f32, pad rows = 0
        sq_row = sq.reshape(n_pad, 1)
        sq_col = sq.reshape(1, n_pad)
        x_in = x_p.astype(in_dtype)                           # single wrapper-side cast

        cost = pl.CostEstimate(
            flops=2 * (gi * TM) * (gj * TN) * d,
            transcendentals=(gi * TM) * (gj * TN),
            bytes_accessed=(gi * TM * d * in_isz              # row blocks (once per i)
                            + gi * gj * TN * d * in_isz       # col blocks (re-read gi x)
                            + N * N * 4                       # output
                            + (gi * TM + gi * gj * TN) * 4))  # norms

        a = pl.pallas_call(
            partial(_gram_kernel,
                    inv_two_sigma2=float(inv_two_sigma2),
                    log_n=float(math.log(N))),
            out_shape=jax.ShapeDtypeStruct((N, N), jnp.float32),
            grid=grid,
            in_specs=[
                pl.BlockSpec((TM, d), lambda i, j: (i, 0)),   # row block of x
                pl.BlockSpec((TN, d), lambda i, j: (j, 0)),   # col block of x (streams)
                pl.BlockSpec((TM, 1), lambda i, j: (i, 0)),   # row squared norms
                pl.BlockSpec((1, TN), lambda i, j: (0, j)),   # col squared norms
            ],
            out_specs=pl.BlockSpec((TM, TN), lambda i, j: (i, j)),
            compiler_params=pltpu.CompilerParams(
                dimension_semantics=("parallel", "parallel"),
                vmem_limit_bytes=int(vmem_budget)),
            cost_estimate=cost,
        )(x_in, x_in, sq_row, sq_col)

        return a

    def entropy(self, A):
        # TODO(synk): torch.symeig / eigendecomposition has no Pallas equivalent;
        #             jnp.linalg.eigh runs as a regular XLA op (and dominates at
        #             large N).  A is bitwise symmetric by construction, so skip
        #             the (A + A.T)/2 pre-pass.  O(N) eigenvalue post-processing
        #             stays plain JAX (a pallas_call here is pure dispatch overhead).
        ev = jnp.linalg.eigh(A, symmetrize_input=False)[0].astype(jnp.float32)
        ev = jnp.maximum(ev, 0.0)                                 # ReLU
        ev = ev / jnp.sum(ev)
        p = jnp.where(ev > 0.0, jnp.power(ev, self.alpha), 0.0)   # 0^alpha -> 0
        return jnp.log(jnp.sum(p)) / (1.0 - self.alpha)

    def forward(self, x):
        A = self.gaussian_gram(x)
        S = self.entropy(A)
        return S

    __call__ = forward


# ------------------------- reference (plain JAX) -------------------------

def _reference(x, sigma_zero, alpha):
    N, d = x.shape
    sigma = sigma_zero * N ** (-1.0 / (4 + d))
    diff = x[:, None, :] - x[None, :, :]
    A = jnp.exp(-0.5 * jnp.sum(diff ** 2, axis=2) / sigma ** 2)
    A = A / jnp.trace(A)
    ev = jnp.maximum(jnp.linalg.eigh(A)[0], 0.0)
    ev = ev / jnp.sum(ev)
    return jnp.log(jnp.sum(jnp.where(ev > 0, ev ** alpha, 0.0))) / (1.0 - alpha)


# ------------------------- main -------------------------

if __name__ == "__main__":
    key = jax.random.PRNGKey(0)
    N, d = 8, 32                       # small shapes: 8 samples, 32 features
    x = jax.random.normal(key, (N, d), dtype=jnp.float32)

    model = AlphaEntropy(sigma_zero=1.0, alpha=1.01)
    S = model(x)
    S = jax.block_until_ready(S)

    S_ref = jax.block_until_ready(_reference(x, 1.0, 1.01))
    assert jnp.isfinite(S), "non-finite entropy"
    assert abs(float(S) - float(S_ref)) < 1e-3, (float(S), float(S_ref))

    print("KERNEL_OK")
</pallas_src>

<mosaic_0001>
module attributes {stable_mosaic.version = 11 : i64} {
  func.func @_gram_kernel(%arg0: i32, %arg1: i32, %arg2: memref<128x32xf32, #tpu.memory_space<vmem>>, %arg3: memref<128x32xf32, #tpu.memory_space<vmem>>, %arg4: memref<128x1xf32, #tpu.memory_space<vmem>>, %arg5: memref<1x128xf32, #tpu.memory_space<vmem>>, %arg6: memref<128x128xf32, #tpu.memory_space<vmem>>) attributes {dimension_semantics = [#tpu.dimension_semantics<parallel>, #tpu.dimension_semantics<parallel>], iteration_bounds = array<i64: 1, 1>, scalar_prefetch = 0 : i64, scratch_operands = 0 : i64, tpu.core_type = #tpu.core_type<tc>, window_params = [{transform_indices = @transform_0, window_bounds = array<i64: 128, 32>}, {transform_indices = @transform_1, window_bounds = array<i64: 128, 32>}, {transform_indices = @transform_2, window_bounds = array<i64: 128, 1>}, {transform_indices = @transform_3, window_bounds = array<i64: 1, 128>}, {transform_indices = @transform_4, window_bounds = array<i64: 128, 128>}]} {
    %c0 = arith.constant 0 : index
    %c0_0 = arith.constant 0 : index
    %0 = vector.load %arg2[%c0, %c0_0] : memref<128x32xf32, #tpu.memory_space<vmem>>, vector<128x32xf32>
    %c0_1 = arith.constant 0 : index
    %c0_2 = arith.constant 0 : index
    %1 = vector.load %arg3[%c0_1, %c0_2] : memref<128x32xf32, #tpu.memory_space<vmem>>, vector<128x32xf32>
    %cst = arith.constant dense<0.000000e+00> : vector<128x128xf32>
    %2 = tpu.matmul %0, %1, %cst {dimension_numbers = #tpu.dot_dimension_numbers<[1], [1], [0], [0], [0, 0, 1, 0], [], []>} : vector<128x32xf32>, vector<128x32xf32>, vector<128x128xf32> -> vector<128x128xf32>
    %c0_3 = arith.constant 0 : index
    %c0_4 = arith.constant 0 : index
    %3 = vector.load %arg4[%c0_3, %c0_4] : memref<128x1xf32, #tpu.memory_space<vmem>>, vector<128x1xf32>
    %c0_5 = arith.constant 0 : index
    %c0_6 = arith.constant 0 : index
    %4 = vector.load %arg5[%c0_5, %c0_6] : memref<1x128xf32, #tpu.memory_space<vmem>>, vector<1x128xf32>
    %5 = vector.broadcast %3 : vector<128x1xf32> to vector<128x128xf32>
    %6 = vector.broadcast %4 : vector<1x128xf32> to vector<128x128xf32>
    %7 = arith.addf %5, %6 : vector<128x128xf32>
    %cst_7 = arith.constant 2.000000e+00 : f32
    %8 = vector.broadcast %cst_7 : f32 to vector<128x128xf32>
    %9 = arith.mulf %8, %2 : vector<128x128xf32>
    %10 = arith.subf %7, %9 : vector<128x128xf32>
    %cst_8 = arith.constant 0.000000e+00 : f32
    %11 = vector.broadcast %cst_8 : f32 to vector<128x128xf32>
    %12 = arith.maximumf %10, %11 : vector<128x128xf32>
    %c128_i32 = arith.constant 128 : i32
    %13 = arith.muli %arg0, %c128_i32 : i32
    %14 = tpu.iota {dimensions = array<i32: 0>} : vector<128x128xi32>
    %15 = vector.broadcast %13 : i32 to vector<128x128xi32>
    %16 = arith.addi %15, %14 : vector<128x128xi32>
    %c128_i32_9 = arith.constant 128 : i32
    %17 = arith.muli %arg1, %c128_i32_9 : i32
    %18 = tpu.iota {dimensions = array<i32: 1>} : vector<128x128xi32>
    %19 = vector.broadcast %17 : i32 to vector<128x128xi32>
    %20 = arith.addi %19, %18 : vector<128x128xi32>
    %21 = arith.cmpi eq, %16, %20 : vector<128x128xi32>
    %cst_10 = arith.constant 0.000000e+00 : f32
    %22 = vector.broadcast %cst_10 : f32 to vector<128x128xf32>
    %23 = arith.select %21, %22, %12 : vector<128x128xi1>, vector<128x128xf32>
    %cst_11 = arith.constant 0.000000e+00 : f32
    %24 = vector.broadcast %cst_11 : f32 to vector<128x128xf32>
    %25 = arith.subf %24, %23 : vector<128x128xf32>
    %cst_12 = arith.constant 5.612310e-01 : f32
    %26 = vector.broadcast %cst_12 : f32 to vector<128x128xf32>
    %27 = arith.mulf %25, %26 : vector<128x128xf32>
    %cst_13 = arith.constant 2.07944155 : f32
    %28 = vector.broadcast %cst_13 : f32 to vector<128x128xf32>
    %29 = arith.subf %27, %28 : vector<128x128xf32>
    %30 = math.exp %29 : vector<128x128xf32>
    %c0_14 = arith.constant 0 : index
    %c0_15 = arith.constant 0 : index
    %31 = vector.load %arg6[%c0_14, %c0_15] : memref<128x128xf32, #tpu.memory_space<vmem>>, vector<128x128xf32>
    tpu.vector_store %arg6[%c0_14, %c0_15], %30 {strides = array<i32>} : memref<128x128xf32, #tpu.memory_space<vmem>>, vector<128x128xf32>,
    return
  }
  func.func @transform_0(%arg0: i32, %arg1: i32) -> (i32, i32) {
    %c0_i32 = arith.constant 0 : i32
    %c0_i32_0 = arith.constant 0 : i32
    return %arg0, %c0_i32 : i32, i32
  }
  func.func @transform_1(%arg0: i32, %arg1: i32) -> (i32, i32) {
    %c0_i32 = arith.constant 0 : i32
    %c0_i32_0 = arith.constant 0 : i32
    return %arg1, %c0_i32 : i32, i32
  }
  func.func @transform_2(%arg0: i32, %arg1: i32) -> (i32, i32) {
    %c0_i32 = arith.constant 0 : i32
    %c0_i32_0 = arith.constant 0 : i32
    return %arg0, %c0_i32 : i32, i32
  }
  func.func @transform_3(%arg0: i32, %arg1: i32) -> (i32, i32) {
    %c0_i32 = arith.constant 0 : i32
    %c0_i32_0 = arith.constant 0 : i32
    return %c0_i32, %arg1 : i32, i32
  }
  func.func @transform_4(%arg0: i32, %arg1: i32) -> (i32, i32) {
    %c0_i32 = arith.constant 0 : i32
    return %arg0, %arg1 : i32, i32
  }
}

</mosaic_0001>

<llo_original>
// kernel: tpu_custom_call.1
$region0: #{tpu_custom_call.1}
  #allocation0 [shape = 'u32[]', space=smem, size = 0x4, offset = 0x4, fixed_abs, tag = 'smem constant byte address 0x4 - core index']
  #allocation1 [shape = 'u32[144,128]{1,0:T(1,128)}', space=vmem, size = 0x12000, scoped, tag = 'internal scratch']
  %s0 = inlined_call_operand.vmem [shape: f32[128,32], index: 0, kind: input, shape index: {}]
  %s1 = inlined_call_operand.vmem [shape: f32[128,32], index: 1, kind: input, shape index: {}]
  %s2 = inlined_call_operand.vmem [shape: f32[128,1], index: 2, kind: input, shape index: {}]
  %s3 = inlined_call_operand.vmem [shape: f32[1,128], index: 3, kind: input, shape index: {}]
  %s4 = inlined_call_operand.hbm [shape: f32[8,8], index: 4, kind: output, shape index: {}]
  %s5 = sld [smem:[#allocation0]]
  $region26: #{tpu_custom_call.1} parent=0
    _
  %s7 = ssub.s32 1, %s5
  %s8 = scalar_select 0, %s7, %s5
  $region1: #{tpu_custom_call.1} parent=0
    #allocation2 [shape = 'u8[65536]{0}', space=vmem, size = 0x10000, scoped, tag = 'output window, operand 0, single buffered']
    #allocation3 [shape = 's32[1]{0}', space=sflag, size = 0x4, scoped, tag = 'scoped memory for tpu_custom_call.1']
    %9 = vsyncpa [#allocation3], 0
    // Predicated region
    $region2: #{tpu_custom_call.1} parent=1 // pred_check
      _
    $region3: #{tpu_custom_call.1} parent=1 // pred_check_branch
      %11 = sbr.rel (0) target = $region5
    $region4: #{tpu_custom_call.1} parent=1 // pred_region
      _
    $region5: #{tpu_custom_call.1} parent=1 // pred_fallthru
      _
    // Predicated region
    $region6: #{tpu_custom_call.1} parent=1 // pred_check
      _
    $region7: #{tpu_custom_call.1} parent=1 // pred_check_branch
      %13 = sbr.rel (0) target = $region9
    $region8: #{tpu_custom_call.1} parent=1 // pred_region
      _
    $region9: #{tpu_custom_call.1} parent=1 // pred_fallthru
      _
    // Predicated region
    $region10: #{tpu_custom_call.1} parent=1 // pred_check
      _
    $region11: #{tpu_custom_call.1} parent=1 // pred_check_branch
      %15 = sbr.rel (0) target = $region13
    $region12: #{tpu_custom_call.1} parent=1 // pred_region
      _
    $region13: #{tpu_custom_call.1} parent=1 // pred_fallthru
      _
    // Predicated region
    $region14: #{tpu_custom_call.1} parent=1 // pred_check
      _
    $region15: #{tpu_custom_call.1} parent=1 // pred_check_branch
      %17 = sbr.rel (0) target = $region17
    $region16: #{tpu_custom_call.1} parent=1 // pred_region
      _
    $region17: #{tpu_custom_call.1} parent=1 // pred_fallthru
      _
    %v18 = vld [vmem:[%s0] sm:$0xff]
    %v19 = vld [vmem:[%s0 + $0x8] sm:$0xff]
    %v20 = vld [vmem:[%s0 + $0x10] sm:$0xff]
    %v21 = vld [vmem:[%s0 + $0x18] sm:$0xff]
    %v22 = vld [vmem:[%s0 + $0x20] sm:$0xff]
    %v23 = vld [vmem:[%s0 + $0x28] sm:$0xff]
    %v24 = vld [vmem:[%s0 + $0x30] sm:$0xff]
    %v25 = vld [vmem:[%s0 + $0x38] sm:$0xff]
    %v26 = vld [vmem:[%s0 + $0x40] sm:$0xff]
    %v27 = vld [vmem:[%s0 + $0x48] sm:$0xff]
    %v28 = vld [vmem:[%s0 + $0x50] sm:$0xff]
    %v29 = vld [vmem:[%s0 + $0x58] sm:$0xff]
    %v30 = vld [vmem:[%s0 + $0x60] sm:$0xff]
    %v31 = vld [vmem:[%s0 + $0x68] sm:$0xff]
    %v32 = vld [vmem:[%s0 + $0x70] sm:$0xff]
    %v33 = vld [vmem:[%s0 + $0x78] sm:$0xff]
    %v34 = vld [vmem:[%s1] sm:$0xff]
    %v35 = vld [vmem:[%s1 + $0x8] sm:$0xff]
    %v36 = vld [vmem:[%s1 + $0x10] sm:$0xff]
    %v37 = vld [vmem:[%s1 + $0x18] sm:$0xff]
    %v38 = vld [vmem:[%s1 + $0x20] sm:$0xff]
    %v39 = vld [vmem:[%s1 + $0x28] sm:$0xff]
    %v40 = vld [vmem:[%s1 + $0x30] sm:$0xff]
    %v41 = vld [vmem:[%s1 + $0x38] sm:$0xff]
    %v42 = vld [vmem:[%s1 + $0x40] sm:$0xff]
    %v43 = vld [vmem:[%s1 + $0x48] sm:$0xff]
    %v44 = vld [vmem:[%s1 + $0x50] sm:$0xff]
    %v45 = vld [vmem:[%s1 + $0x58] sm:$0xff]
    %v46 = vld [vmem:[%s1 + $0x60] sm:$0xff]
    %v47 = vld [vmem:[%s1 + $0x68] sm:$0xff]
    %v48 = vld [vmem:[%s1 + $0x70] sm:$0xff]
    %v49 = vld [vmem:[%s1 + $0x78] sm:$0xff]
    %vm50 = vcmask 261120
    %v52 = vsel %vm50, %v18, 0
    %v55 = vsel %vm50, %v19, 0
    %v58 = vsel %vm50, %v20, 0
    %v61 = vsel %vm50, %v21, 0
    %v64 = vsel %vm50, %v22, 0
    %v67 = vsel %vm50, %v23, 0
    %v70 = vsel %vm50, %v24, 0
    %v73 = vsel %vm50, %v25, 0
    %v76 = vsel %vm50, %v26, 0
    %v79 = vsel %vm50, %v27, 0
    %v82 = vsel %vm50, %v28, 0
    %v85 = vsel %vm50, %v29, 0
    %v88 = vsel %vm50, %v30, 0
    %v91 = vsel %vm50, %v31, 0
    %v94 = vsel %vm50, %v32, 0
    %v97 = vsel %vm50, %v33, 0
    %v100 = vsel %vm50, %v34, 0
    %v103 = vsel %vm50, %v35, 0
    %v106 = vsel %vm50, %v36, 0
    %v109 = vsel %vm50, %v37, 0
    %v112 = vsel %vm50, %v38, 0
    %v115 = vsel %vm50, %v39, 0
    %v118 = vsel %vm50, %v40, 0
    %v121 = vsel %vm50, %v41, 0
    %v124 = vsel %vm50, %v42, 0
    %v127 = vsel %vm50, %v43, 0
    %v130 = vsel %vm50, %v44, 0
    %v133 = vsel %vm50, %v45, 0
    %v136 = vsel %vm50, %v46, 0
    %v139 = vsel %vm50, %v47, 0
    %v142 = vsel %vm50, %v48, 0
    %v145 = vsel %vm50, %v49, 0
    %147 = vmatprep.subr.mxu0 0.0
    %148 = vmatpush1.xpose.msra.mxu0 %v100
    %149 = vmatprep.subr.mxu0 0.0
    %150 = vmatpush1.xpose.msra.mxu0 %v103
    %151 = vmatprep.subr.mxu0 0.0
    %152 = vmatpush1.xpose.msra.mxu0 %v106
    %153 = vmatprep.subr.mxu0 0.0
    %154 = vmatpush1.xpose.msra.mxu0 %v109
    %155 = vmatprep.subr.mxu0 0.0
    %156 = vmatpush1.xpose.msra.mxu0 %v112
    %157 = vmatprep.subr.mxu0 0.0
    %158 = vmatpush1.xpose.msra.mxu0 %v115
    %159 = vmatprep.subr.mxu0 0.0
    %160 = vmatpush1.xpose.msra.mxu0 %v118
    %161 = vmatprep.subr.mxu0 0.0
    %162 = vmatpush1.xpose.msra.mxu0 %v121
    %163 = vmatprep.subr.mxu0 0.0
    %164 = vmatpush1.xpose.msra.mxu0 %v124
    %165 = vmatprep.subr.mxu0 0.0
    %166 = vmatpush1.xpose.msra.mxu0 %v127
    %167 = vmatprep.subr.mxu0 0.0
    %168 = vmatpush1.xpose.msra.mxu0 %v130
    %169 = vmatprep.subr.mxu0 0.0
    %170 = vmatpush1.xpose.msra.mxu0 %v133
    %171 = vmatprep.subr.mxu0 0.0
    %172 = vmatpush1.xpose.msra.mxu0 %v136
    %173 = vmatprep.subr.mxu0 0.0
    %174 = vmatpush1.xpose.msra.mxu0 %v139
    %175 = vmatprep.subr.mxu0 0.0
    %176 = vmatpush1.xpose.msra.mxu0 %v142
    %177 = vmatprep.subr.mxu0 0.0
    %178 = vmatpush1.xpose.msra.mxu0 %v145
    %179 = vmatprep.subr.mxu0 0.0
    %180 = vmatpush1.xpose.msra.mxu0 0.0
    %181 = vmatprep.subr.mxu0 0.0
    %182 = vmatpush1.xpose.msra.mxu0 0.0
    %183 = vmatprep.subr.mxu0 0.0
    %184 = vmatpush1.xpose.msra.mxu0 0.0
    %185 = vmatprep.subr.mxu0 0.0
    %186 = vmatpush1.xpose.msra.mxu0 0.0
    %187 = vmatprep.subr.mxu0 0.0
    %188 = vmatpush1.xpose.msra.mxu0 0.0
    %189 = vmatprep.subr.mxu0 0.0
    %190 = vmatpush1.xpose.msra.mxu0 0.0
    %191 = vmatprep.subr.mxu0 0.0
    %192 = vmatpush1.xpose.msra.mxu0 0.0
    %193 = vmatprep.subr.mxu0 0.0
    %194 = vmatpush1.xpose.msra.mxu0 0.0
    %195 = vmatprep.subr.mxu0 0.0
    %196 = vmatpush1.xpose.msra.mxu0 0.0
    %197 = vmatprep.subr.mxu0 0.0
    %198 = vmatpush1.xpose.msra.mxu0 0.0
    %199 = vmatprep.subr.mxu0 0.0
    %200 = vmatpush1.xpose.msra.mxu0 0.0
    %201 = vmatprep.subr.mxu0 0.0
    %202 = vmatpush1.xpose.msra.mxu0 0.0
    %203 = vmatprep.subr.mxu0 0.0
    %204 = vmatpush1.xpose.msra.mxu0 0.0
    %205 = vmatprep.subr.mxu0 0.0
    %206 = vmatpush1.xpose.msra.mxu0 0.0
    %207 = vmatprep.subr.mxu0 0.0
    %208 = vmatpush1.xpose.msra.mxu0 0.0
    %209 = vmatprep.subr.mxu0 0.0
    %210 = vmatpush1.xpose.msra.mxu0 0.0
    %211 = vmatprep.mubr.f32.mxu0 0.0
    %212 = vmatmul.mubr.f32.gmra.mrb[0].mxu0 %v52
    %v213 = vpop.f32.mrb[0].mxu0
    %v214 = vadd.f32 0.0, %v213
    %v215 = vpop.f32.mrb[0].mxu0
    %216 = vmatprep.mubr.f32.mxu0 0.0
    %217 = vmatmul.mubr.f32.gmra.mrb[0].mxu0 %v55
    %v218 = vpop.f32.mrb[0].mxu0
    %v219 = vadd.f32 0.0, %v218
    %v220 = vpop.f32.mrb[0].mxu0
    %221 = vmatprep.mubr.f32.mxu0 0.0
    %222 = vmatmul.mubr.f32.gmra.mrb[0].mxu0 %v58
    %v223 = vpop.f32.mrb[0].mxu0
    %v224 = vadd.f32 0.0, %v223
    %v225 = vpop.f32.mrb[0].mxu0
    %226 = vmatprep.mubr.f32.mxu0 0.0
    %227 = vmatmul.mubr.f32.gmra.mrb[0].mxu0 %v61
    %v228 = vpop.f32.mrb[0].mxu0
    %v229 = vadd.f32 0.0, %v228
    %v230 = vpop.f32.mrb[0].mxu0
    %231 = vmatprep.mubr.f32.mxu0 0.0
    %232 = vmatmul.mubr.f32.gmra.mrb[0].mxu0 %v64
    %v233 = vpop.f32.mrb[0].mxu0
    %v234 = vadd.f32 0.0, %v233
    %v235 = vpop.f32.mrb[0].mxu0
    %236 = vmatprep.mubr.f32.mxu0 0.0
    %237 = vmatmul.mubr.f32.gmra.mrb[0].mxu0 %v67
    %v238 = vpop.f32.mrb[0].mxu0
    %v239 = vadd.f32 0.0, %v238
    %v240 = vpop.f32.mrb[0].mxu0
    %241 = vmatprep.mubr.f32.mxu0 0.0
    %242 = vmatmul.mubr.f32.gmra.mrb[0].mxu0 %v70
    %v243 = vpop.f32.mrb[0].mxu0
    %v244 = vadd.f32 0.0, %v243
    %v245 = vpop.f32.mrb[0].mxu0
    %246 = vmatprep.mubr.f32.mxu0 0.0
    %247 = vmatmul.mubr.f32.gmra.mrb[0].mxu0 %v73
    %v248 = vpop.f32.mrb[0].mxu0
    %v249 = vadd.f32 0.0, %v248
    %v250 = vpop.f32.mrb[0].mxu0
    %251 = vmatprep.mubr.f32.mxu0 0.0
    %252 = vmatmul.mubr.f32.gmra.mrb[0].mxu0 %v76
    %v253 = vpop.f32.mrb[0].mxu0
    %v254 = vadd.f32 0.0, %v253
    %v255 = vpop.f32.mrb[0].mxu0
    %256 = vmatprep.mubr.f32.mxu0 0.0
    %257 = vmatmul.mubr.f32.gmra.mrb[0].mxu0 %v79
    %v258 = vpop.f32.mrb[0].mxu0
    %v259 = vadd.f32 0.0, %v258
    %v260 = vpop.f32.mrb[0].mxu0
    %261 = vmatprep.mubr.f32.mxu0 0.0
    %262 = vmatmul.mubr.f32.gmra.mrb[0].mxu0 %v82
    %v263 = vpop.f32.mrb[0].mxu0
    %v264 = vadd.f32 0.0, %v263
    %v265 = vpop.f32.mrb[0].mxu0
    %266 = vmatprep.mubr.f32.mxu0 0.0
    %267 = vmatmul.mubr.f32.gmra.mrb[0].mxu0 %v85
    %v268 = vpop.f32.mrb[0].mxu0
    %v269 = vadd.f32 0.0, %v268
    %v270 = vpop.f32.mrb[0].mxu0
    %271 = vmatprep.mubr.f32.mxu0 0.0
    %272 = vmatmul.mubr.f32.gmra.mrb[0].mxu0 %v88
    %v273 = vpop.f32.mrb[0].mxu0
    %v274 = vadd.f32 0.0, %v273
    %v275 = vpop.f32.mrb[0].mxu0
    %276 = vmatprep.mubr.f32.mxu0 0.0
    %277 = vmatmul.mubr.f32.gmra.mrb[0].mxu0 %v91
    %v278 = vpop.f32.mrb[0].mxu0
    %v279 = vadd.f32 0.0, %v278
    %v280 = vpop.f32.mrb[0].mxu0
    %281 = vmatprep.mubr.f32.mxu0 0.0
    %282 = vmatmul.mubr.f32.gmra.mrb[0].mxu0 %v94
    %v283 = vpop.f32.mrb[0].mxu0
    %v284 = vadd.f32 0.0, %v283
    %v285 = vpop.f32.mrb[0].mxu0
    %286 = vmatprep.mubr.f32.mxu0 0.0
    %287 = vmatmul.mubr.f32.gmra.mrb[0].mxu0 %v97
    %v288 = vpop.f32.mrb[0].mxu0
    %v289 = vadd.f32 0.0, %v288
    %v290 = vpop.f32.mrb[0].mxu0
    %291 = vdwg.mxu0
    %v292 = vld [vmem:[%s2] sm:$0xff]
    %v293 = vld [vmem:[%s2 + $0x8] sm:$0xff]
    %v294 = vld [vmem:[%s2 + $0x10] sm:$0xff]
    %v295 = vld [vmem:[%s2 + $0x18] sm:$0xff]
    %v296 = vld [vmem:[%s2 + $0x20] sm:$0xff]
    %v297 = vld [vmem:[%s2 + $0x28] sm:$0xff]
    %v298 = vld [vmem:[%s2 + $0x30] sm:$0xff]
    %v299 = vld [vmem:[%s2 + $0x38] sm:$0xff]
    %v300 = vld [vmem:[%s2 + $0x40] sm:$0xff]
    %v301 = vld [vmem:[%s2 + $0x48] sm:$0xff]
    %v302 = vld [vmem:[%s2 + $0x50] sm:$0xff]
    %v303 = vld [vmem:[%s2 + $0x58] sm:$0xff]
    %v304 = vld [vmem:[%s2 + $0x60] sm:$0xff]
    %v305 = vld [vmem:[%s2 + $0x68] sm:$0xff]
    %v306 = vld [vmem:[%s2 + $0x70] sm:$0xff]
    %v307 = vld [vmem:[%s2 + $0x78] sm:$0xff]
    %v308 = vld [vmem:[%s3] sm:$0x1]
    %310 = vset.pattern.permute.xlu0 0
    %311 = vperm.xlu0 %310, %v292
    %v312 = vpop.permute.xlu0 %311
    %315 = vset.pattern.permute.xlu0 0
    %316 = vperm.xlu0 %315, %v293
    %v317 = vpop.permute.xlu0 %316
    %320 = vset.pattern.permute.xlu0 0
    %321 = vperm.xlu0 %320, %v294
    %v322 = vpop.permute.xlu0 %321
    %325 = vset.pattern.permute.xlu0 0
    %326 = vperm.xlu0 %325, %v295
    %v327 = vpop.permute.xlu0 %326
    %330 = vset.pattern.permute.xlu0 0
    %331 = vperm.xlu0 %330, %v296
    %v332 = vpop.permute.xlu0 %331
    %335 = vset.pattern.permute.xlu0 0
    %336 = vperm.xlu0 %335, %v297
    %v337 = vpop.permute.xlu0 %336
    %340 = vset.pattern.permute.xlu0 0
    %341 = vperm.xlu0 %340, %v298
    %v342 = vpop.permute.xlu0 %341
    %345 = vset.pattern.permute.xlu0 0
    %346 = vperm.xlu0 %345, %v299
    %v347 = vpop.permute.xlu0 %346
    %350 = vset.pattern.permute.xlu0 0
    %351 = vperm.xlu0 %350, %v300
    %v352 = vpop.permute.xlu0 %351
    %355 = vset.pattern.permute.xlu0 0
    %356 = vperm.xlu0 %355, %v301
    %v357 = vpop.permute.xlu0 %356
    %360 = vset.pattern.permute.xlu0 0
    %361 = vperm.xlu0 %360, %v302
    %v362 = vpop.permute.xlu0 %361
    %365 = vset.pattern.permute.xlu0 0
    %366 = vperm.xlu0 %365, %v303
    %v367 = vpop.permute.xlu0 %366
    %370 = vset.pattern.permute.xlu0 0
    %371 = vperm.xlu0 %370, %v304
    %v372 = vpop.permute.xlu0 %371
    %375 = vset.pattern.permute.xlu0 0
    %376 = vperm.xlu0 %375, %v305
    %v377 = vpop.permute.xlu0 %376
    %380 = vset.pattern.permute.xlu0 0
    %381 = vperm.xlu0 %380, %v306
    %v382 = vpop.permute.xlu0 %381
    %385 = vset.pattern.permute.xlu0 0
    %386 = vperm.xlu0 %385, %v307
    %v387 = vpop.permute.xlu0 %386
    %v390 = vlaneseq
    %v391 = vshrl.u32 %v390, 7
    %v392 = vsub.s32 0, %v391
    %v393 = vrot.slane %v308, %v392
    %v395 = vadd.f32 %v312, %v393
    %v396 = vadd.f32 %v317, %v393
    %v397 = vadd.f32 %v322, %v393
    %v398 = vadd.f32 %v327, %v393
    %v399 = vadd.f32 %v332, %v393
    %v400 = vadd.f32 %v337, %v393
    %v401 = vadd.f32 %v342, %v393
    %v402 = vadd.f32 %v347, %v393
    %v403 = vadd.f32 %v352, %v393
    %v404 = vadd.f32 %v357, %v393
    %v405 = vadd.f32 %v362, %v393
    %v406 = vadd.f32 %v367, %v393
    %v407 = vadd.f32 %v372, %v393
    %v408 = vadd.f32 %v377, %v393
    %v409 = vadd.f32 %v382, %v393
    %v410 = vadd.f32 %v387, %v393
    %v411 = vmul.f32 %v214, 2.0
    %v412 = vmul.f32 %v219, 2.0
    %v413 = vmul.f32 %v224, 2.0
    %v414 = vmul.f32 %v229, 2.0
    %v415 = vmul.f32 %v234, 2.0
    %v416 = vmul.f32 %v239, 2.0
    %v417 = vmul.f32 %v244, 2.0
    %v418 = vmul.f32 %v249, 2.0
    %v419 = vmul.f32 %v254, 2.0
    %v420 = vmul.f32 %v259, 2.0
    %v421 = vmul.f32 %v264, 2.0
    %v422 = vmul.f32 %v269, 2.0
    %v423 = vmul.f32 %v274, 2.0
    %v424 = vmul.f32 %v279, 2.0
    %v425 = vmul.f32 %v284, 2.0
    %v426 = vmul.f32 %v289, 2.0
    %v427 = vsub.f32 %v395, %v411
    %v428 = vsub.f32 %v396, %v412
    %v429 = vsub.f32 %v397, %v413
    %v430 = vsub.f32 %v398, %v414
    %v431 = vsub.f32 %v399, %v415
    %v432 = vsub.f32 %v400, %v416
    %v433 = vsub.f32 %v401, %v417
    %v434 = vsub.f32 %v402, %v418
    %v435 = vsub.f32 %v403, %v419
    %v436 = vsub.f32 %v404, %v420
    %v437 = vsub.f32 %v405, %v421
    %v438 = vsub.f32 %v406, %v422
    %v439 = vsub.f32 %v407, %v423
    %v440 = vsub.f32 %v408, %v424
    %v441 = vsub.f32 %v409, %v425
    %v442 = vsub.f32 %v410, %v426
    %v443 = vmax.f32 %v427, 0.0
    %v444 = vmax.f32 %v428, 0.0
    %v445 = vmax.f32 %v429, 0.0
    %v446 = vmax.f32 %v430, 0.0
    %v447 = vmax.f32 %v431, 0.0
    %v448 = vmax.f32 %v432, 0.0
    %v449 = vmax.f32 %v433, 0.0
    %v450 = vmax.f32 %v434, 0.0
    %v451 = vmax.f32 %v435, 0.0
    %v452 = vmax.f32 %v436, 0.0
    %v453 = vmax.f32 %v437, 0.0
    %v454 = vmax.f32 %v438, 0.0
    %v455 = vmax.f32 %v439, 0.0
    %v456 = vmax.f32 %v440, 0.0
    %v457 = vmax.f32 %v441, 0.0
    %v458 = vmax.f32 %v442, 0.0
    %s459 = smul.u32 0, 128
    %v460 = vlaneseq
    %v461 = vshrl.u32 %v460, 7
    %v462 = vadd.s32 %v461, 8
    %v463 = vadd.s32 %v461, 16
    %v464 = vadd.s32 %v461, 24
    %v465 = vadd.s32 %v461, 32
    %v466 = vadd.s32 %v461, 40
    %v467 = vadd.s32 %v461, 48
    %v468 = vadd.s32 %v461, 56
    %v469 = vadd.s32 %v461, 64
    %v470 = vadd.s32 %v461, 72
    %v471 = vadd.s32 %v461, 80
    %v472 = vadd.s32 %v461, 88
    %v473 = vadd.s32 %v461, 96
    %v474 = vadd.s32 %v461, 104
    %v475 = vadd.s32 %v461, 112
    %v476 = vadd.s32 %v461, 120
    %v477 = vstv %s459
    %v478 = vadd.s32 %v477, %v461
    %v479 = vadd.s32 %v477, %v462
    %v480 = vadd.s32 %v477, %v463
    %v481 = vadd.s32 %v477, %v464
    %v482 = vadd.s32 %v477, %v465
    %v483 = vadd.s32 %v477, %v466
    %v484 = vadd.s32 %v477, %v467
    %v485 = vadd.s32 %v477, %v468
    %v486 = vadd.s32 %v477, %v469
    %v487 = vadd.s32 %v477, %v470
    %v488 = vadd.s32 %v477, %v471
    %v489 = vadd.s32 %v477, %v472
    %v490 = vadd.s32 %v477, %v473
    %v491 = vadd.s32 %v477, %v474
    %v492 = vadd.s32 %v477, %v475
    %v493 = vadd.s32 %v477, %v476
    %s494 = smul.u32 0, 128
    %v495 = vlaneseq
    %v496 = vand.u32 %v495, 127
    %v497 = vstv %s494
    %v498 = vadd.s32 %v497, %v496
    %vm499 = vcmp.eq.s32.totalorder %v478, %v498
    %vm500 = vcmp.eq.s32.totalorder %v479, %v498
    %vm501 = vcmp.eq.s32.totalorder %v480, %v498
    %vm502 = vcmp.eq.s32.totalorder %v481, %v498
    %vm503 = vcmp.eq.s32.totalorder %v482, %v498
    %vm504 = vcmp.eq.s32.totalorder %v483, %v498
    %vm505 = vcmp.eq.s32.totalorder %v484, %v498
    %vm506 = vcmp.eq.s32.totalorder %v485, %v498
    %vm507 = vcmp.eq.s32.totalorder %v486, %v498
    %vm508 = vcmp.eq.s32.totalorder %v487, %v498
    %vm509 = vcmp.eq.s32.totalorder %v488, %v498
    %vm510 = vcmp.eq.s32.totalorder %v489, %v498
    %vm511 = vcmp.eq.s32.totalorder %v490, %v498
    %vm512 = vcmp.eq.s32.totalorder %v491, %v498
    %vm513 = vcmp.eq.s32.totalorder %v492, %v498
    %vm514 = vcmp.eq.s32.totalorder %v493, %v498
    %v515 = vsel %vm499, 0.0, %v443
    %v516 = vsel %vm500, 0.0, %v444
    %v517 = vsel %vm501, 0.0, %v445
    %v518 = vsel %vm502, 0.0, %v446
    %v519 = vsel %vm503, 0.0, %v447
    %v520 = vsel %vm504, 0.0, %v448
    %v521 = vsel %vm505, 0.0, %v449
    %v522 = vsel %vm506, 0.0, %v450
    %v523 = vsel %vm507, 0.0, %v451
    %v524 = vsel %vm508, 0.0, %v452
    %v525 = vsel %vm509, 0.0, %v453
    %v526 = vsel %vm510, 0.0, %v454
    %v527 = vsel %vm511, 0.0, %v455
    %v528 = vsel %vm512, 0.0, %v456
    %v529 = vsel %vm513, 0.0, %v457
    %v530 = vsel %vm514, 0.0, %v458
    %v531 = vsub.f32 0.0, %v515
    %v532 = vsub.f32 0.0, %v516
    %v533 = vsub.f32 0.0, %v517
    %v534 = vsub.f32 0.0, %v518
    %v535 = vsub.f32 0.0, %v519
    %v536 = vsub.f32 0.0, %v520
    %v537 = vsub.f32 0.0, %v521
    %v538 = vsub.f32 0.0, %v522
    %v539 = vsub.f32 0.0, %v523
    %v540 = vsub.f32 0.0, %v524
    %v541 = vsub.f32 0.0, %v525
    %v542 = vsub.f32 0.0, %v526
    %v543 = vsub.f32 0.0, %v527
    %v544 = vsub.f32 0.0, %v528
    %v545 = vsub.f32 0.0, %v529
    %v546 = vsub.f32 0.0, %v530
    %v547 = vmul.f32 %v531, 0.561231
    %v548 = vmul.f32 %v532, 0.561231
    %v549 = vmul.f32 %v533, 0.561231
    %v550 = vmul.f32 %v534, 0.561231
    %v551 = vmul.f32 %v535, 0.561231
    %v552 = vmul.f32 %v536, 0.561231
    %v553 = vmul.f32 %v537, 0.561231
    %v554 = vmul.f32 %v538, 0.561231
    %v555 = vmul.f32 %v539, 0.561231
    %v556 = vmul.f32 %v540, 0.561231
    %v557 = vmul.f32 %v541, 0.561231
    %v558 = vmul.f32 %v542, 0.561231
    %v559 = vmul.f32 %v543, 0.561231
    %v560 = vmul.f32 %v544, 0.561231
    %v561 = vmul.f32 %v545, 0.561231
    %v562 = vmul.f32 %v546, 0.561231
    %v563 = vsub.f32 %v547, 2.0794415
    %v564 = vsub.f32 %v548, 2.0794415
    %v565 = vsub.f32 %v549, 2.0794415
    %v566 = vsub.f32 %v550, 2.0794415
    %v567 = vsub.f32 %v551, 2.0794415
    %v568 = vsub.f32 %v552, 2.0794415
    %v569 = vsub.f32 %v553, 2.0794415
    %v570 = vsub.f32 %v554, 2.0794415
    %v571 = vsub.f32 %v555, 2.0794415
    %v572 = vsub.f32 %v556, 2.0794415
    %v573 = vsub.f32 %v557, 2.0794415
    %v574 = vsub.f32 %v558, 2.0794415
    %v575 = vsub.f32 %v559, 2.0794415
    %v576 = vsub.f32 %v560, 2.0794415
    %v577 = vsub.f32 %v561, 2.0794415
    %v578 = vsub.f32 %v562, 2.0794415
    %v579 = vmul.f32 %v563, 1.442695
    %v580 = vpow.pop %v579
    %v581 = vmul.f32 %v564, 1.442695
    %v582 = vpow.pop %v581
    %v583 = vmul.f32 %v565, 1.442695
    %v584 = vpow.pop %v583
    %v585 = vmul.f32 %v566, 1.442695
    %v586 = vpow.pop %v585
    %v587 = vmul.f32 %v567, 1.442695
    %v588 = vpow.pop %v587
    %v589 = vmul.f32 %v568, 1.442695
    %v590 = vpow.pop %v589
    %v591 = vmul.f32 %v569, 1.442695
    %v592 = vpow.pop %v591
    %v593 = vmul.f32 %v570, 1.442695
    %v594 = vpow.pop %v593
    %v595 = vmul.f32 %v571, 1.442695
    %v596 = vpow.pop %v595
    %v597 = vmul.f32 %v572, 1.442695
    %v598 = vpow.pop %v597
    %v599 = vmul.f32 %v573, 1.442695
    %v600 = vpow.pop %v599
    %v601 = vmul.f32 %v574, 1.442695
    %v602 = vpow.pop %v601
    %v603 = vmul.f32 %v575, 1.442695
    %v604 = vpow.pop %v603
    %v605 = vmul.f32 %v576, 1.442695
    %v606 = vpow.pop %v605
    %v607 = vmul.f32 %v577, 1.442695
    %v608 = vpow.pop %v607
    %v609 = vmul.f32 %v578, 1.442695
    %v610 = vpow.pop %v609
    %611 = vst [vmem:[#allocation2] sm:$0xff] %v580
    %612 = vst [vmem:[#allocation2 + $0x8] sm:$0xff] %v582
    %613 = vst [vmem:[#allocation2 + $0x10] sm:$0xff] %v584
    %614 = vst [vmem:[#allocation2 + $0x18] sm:$0xff] %v586
    %615 = vst [vmem:[#allocation2 + $0x20] sm:$0xff] %v588
    %616 = vst [vmem:[#allocation2 + $0x28] sm:$0xff] %v590
    %617 = vst [vmem:[#allocation2 + $0x30] sm:$0xff] %v592
    %618 = vst [vmem:[#allocation2 + $0x38] sm:$0xff] %v594
    %619 = vst [vmem:[#allocation2 + $0x40] sm:$0xff] %v596
    %620 = vst [vmem:[#allocation2 + $0x48] sm:$0xff] %v598
    %621 = vst [vmem:[#allocation2 + $0x50] sm:$0xff] %v600
    %622 = vst [vmem:[#allocation2 + $0x58] sm:$0xff] %v602
    %623 = vst [vmem:[#allocation2 + $0x60] sm:$0xff] %v604
    %624 = vst [vmem:[#allocation2 + $0x68] sm:$0xff] %v606
    %625 = vst [vmem:[#allocation2 + $0x70] sm:$0xff] %v608
    %626 = vst [vmem:[#allocation2 + $0x78] sm:$0xff] %v610
    // Predicated region
    $region18: #{tpu_custom_call.1} parent=1 // pred_check
      _
    $region19: #{tpu_custom_call.1} parent=1 // pred_check_branch
      %628 = sbr.rel (0) target = $region21
    $region20: #{tpu_custom_call.1} parent=1 // pred_region
      %s630 = ssub.s32 2048, 128
      %631 = vsyncadd [#allocation3], %s630
      %s632 = sshll.u32 [#allocation2], 4
      %s633 = int_to_ptr.vmem [resolvable:$true] %s632
      %638 = dma.vmem_to_hbm [thread:$0]  %s633, 128, %s4, [#allocation3], 128, 128, 8
    $region21: #{tpu_custom_call.1} parent=1 // pred_fallthru
      _
    // Predicated region
    $region22: #{tpu_custom_call.1} parent=1 // pred_check
      _
    $region23: #{tpu_custom_call.1} parent=1 // pred_check_branch
      %640 = sbr.rel (0) target = $region25
    $region24: #{tpu_custom_call.1} parent=1 // pred_region
      %641 = dma.done [#allocation3], 2048
    $region25: #{tpu_custom_call.1} parent=1 // pred_fallthru
      _
    %642 = vsyncpa [#allocation3], 1

</llo_original>
